<compile_context>
chip_gen: v6e
topology: v6e:2x2x1
jax: 0.10.0
libtpu: 0.0.40
codegen_flags: <defaults>
</compile_context>

<pallas_src>
import numpy as np
import jax
import jax.numpy as jnp
from jax.experimental import pallas as pl
from jax.experimental.pallas import tpu as pltpu

# ---------------- small, structure-preserving hyperparameters ----------------
FILTER_LENGTH = 1
WINDOW_SIZE = 3
TOTAL_LETTER_NGRAM = 128
WORD_DEPTH = WINDOW_SIZE * TOTAL_LETTER_NGRAM      # 384
MAX_POOLING_DIM = 256                              # (300 in original; lane-aligned here)
LATENT_SEMANTIC_DIM = 128
SEQ_LEN = 8
NUM_NEG = 3


# ------------------------------ fused Pallas kernel ---------------------------
def _cdssm_kernel(q_ref, docs_ref,
                  wcq_ref, bcq_ref, wfq_ref, bfq_ref,
                  wcd_ref, bcd_ref, wfd_ref, bfd_ref,
                  out_ref):
    """Whole forward pass in one invocation (no grid).

    q_ref   : (1, L, D)        query (channels-last)
    docs_ref: (1+N, L, D)      pos doc at row 0, neg docs after
    wc*_ref : (D, P)           conv1d (kernel_size=1) weight, transposed
    bc*_ref : (1, P)           conv1d bias
    wf*_ref : (P, K)           fc weight, transposed
    bf*_ref : (1, K)           fc bias
    out_ref : (N, K)           dots[i] broadcast across lanes (sliced outside)
    """
    nd, L, D = docs_ref.shape          # (1+N, L, D)
    P = wcd_ref.shape[1]
    K = wfd_ref.shape[1]
    n_neg = nd - 1

    # ---- query semantic vector ------------------------------------------------
    qh = jnp.tanh(
        jnp.dot(q_ref[0], wcq_ref[...], preferred_element_type=jnp.float32)
        + bcq_ref[...]
    )                                                  # (L, P)
    qm = jnp.max(qh, axis=0, keepdims=True)            # (1, P)  k_max_pooling, k=1
    qv = jnp.tanh(
        jnp.dot(qm, wfq_ref[...], preferred_element_type=jnp.float32)
        + bfq_ref[...]
    )                                                  # (1, K)

    # ---- pos + neg doc semantic vectors (one batched conv matmul) -------------
    x = docs_ref[...].reshape(nd * L, D)               # (nd*L, D)
    h = jnp.tanh(
        jnp.dot(x, wcd_ref[...], preferred_element_type=jnp.float32)
        + bcd_ref[...]
    )                                                  # (nd*L, P)
    m = jnp.max(h.reshape(nd, L, P), axis=1)           # (nd, P)  per-doc max over L
    dv = jnp.tanh(
        jnp.dot(m, wfd_ref[...], preferred_element_type=jnp.float32)
        + bfd_ref[...]
    )                                                  # (nd, K)

    pos = dv[0:1]                                      # (1, K)
    negs = dv[1:]                                      # (N, K)

    # ---- dots: reproduces torch's tensor+list broadcasting quirk ---------------
    #   out[i] = q . pos + q . neg_i
    base = jnp.sum(qv * pos)                                   # scalar
    prods = jnp.sum(qv * negs, axis=1, keepdims=True)          # (N, 1)
    out_ref[...] = base + jnp.broadcast_to(prods, (n_neg, K))  # lane-dense store


# ------------------------------ Python wrapper --------------------------------
def cdssm_forward(params, query, docs):
    """query: (1, L, D); docs: (1+N, L, D) with pos doc first. Returns (N,)."""
    wc_q, bc_q, wf_q, bf_q, wc_d, bc_d, wf_d, bf_d = params
    n_neg = docs.shape[0] - 1
    k = wf_d.shape[1]

    vmem = pl.BlockSpec(memory_space=pltpu.MemorySpace.VMEM)
    out = pl.pallas_call(
        _cdssm_kernel,
        out_shape=jax.ShapeDtypeStruct((n_neg, k), jnp.float32),
        in_specs=[vmem] * 10,
        out_specs=vmem,
    )(query, docs, wc_q, bc_q, wf_q, bf_q, wc_d, bc_d, wf_d, bf_d)
    # dots were broadcast across the lane dim inside the kernel; take lane 0.
    return out[:, 0]


# ------------------------------ reference (plain JAX) -------------------------
def _ref_forward(params, query, docs):
    wc_q, bc_q, wf_q, bf_q, wc_d, bc_d, wf_d, bf_d = params

    def sem(x, wc, bc, wf, bf):
        h = jnp.tanh(x @ wc + bc[0])
        m = jnp.max(h, axis=0)
        return jnp.tanh(m @ wf + bf[0])

    q = sem(query[0], wc_q, bc_q, wf_q, bf_q)
    p = sem(docs[0], wc_d, bc_d, wf_d, bf_d)
    ns = [sem(docs[1 + i], wc_d, bc_d, wf_d, bf_d) for i in range(docs.shape[0] - 1)]
    return jnp.stack([jnp.dot(q, p) + jnp.dot(q, n) for n in ns])


# ----------------------------------- main -------------------------------------
if __name__ == "__main__":
    key = jax.random.PRNGKey(0)
    ks = jax.random.split(key, 12)

    def u(k, shape, fan_in):
        bound = 1.0 / float(np.sqrt(fan_in))
        return jax.random.uniform(k, shape, jnp.float32, -bound, bound)

    D, P, K, L = WORD_DEPTH, MAX_POOLING_DIM, LATENT_SEMANTIC_DIM, SEQ_LEN

    # Parameters (deterministic, PyTorch-default-style uniform init).
    wc_q = u(ks[0], (D, P), D * FILTER_LENGTH)     # query_conv.weight^T
    bc_q = u(ks[1], (1, P), D * FILTER_LENGTH)     # query_conv.bias
    wf_q = u(ks[2], (P, K), P)                     # query_fc.weight^T
    bf_q = u(ks[3], (1, K), P)                     # query_fc.bias
    wc_d = u(ks[4], (D, P), D * FILTER_LENGTH)     # docs_conv.weight^T
    bc_d = u(ks[5], (1, P), D * FILTER_LENGTH)     # docs_conv.bias
    wf_d = u(ks[6], (P, K), P)                     # docs_fc.weight^T
    bf_d = u(ks[7], (1, K), P)                     # docs_fc.bias
    params = (wc_q, bc_q, wf_q, bf_q, wc_d, bc_d, wf_d, bf_d)

    # Inputs: batch must be 1 (forward reshapes semantic vecs to (128,)).
    query = jax.random.normal(ks[8], (1, L, D), jnp.float32)
    pos_doc = jax.random.normal(ks[9], (1, L, D), jnp.float32)
    neg_docs = [
        jax.random.normal(k, (1, L, D), jnp.float32)
        for k in jax.random.split(ks[10], NUM_NEG)
    ]
    # Stacked docs (pos first) — built once at input-prep time, off the kernel
    # critical path.
    docs = jnp.concatenate([pos_doc] + neg_docs, axis=0)   # (1+N, L, D)

    out = cdssm_forward(params, query, docs)
    out = jax.block_until_ready(out)

    ref = _ref_forward(params, query, docs)
    assert out.shape == (NUM_NEG,)
    np.testing.assert_allclose(np.asarray(out), np.asarray(ref), rtol=1e-5, atol=1e-5)

    print("KERNEL_OK")
</pallas_src>

<mosaic_0001>
module attributes {stable_mosaic.version = 11 : i64} {
  func.func @_cdssm_kernel(%arg0: memref<1x8x384xf32, #tpu.memory_space<vmem>>, %arg1: memref<4x8x384xf32, #tpu.memory_space<vmem>>, %arg2: memref<384x256xf32, #tpu.memory_space<vmem>>, %arg3: memref<1x256xf32, #tpu.memory_space<vmem>>, %arg4: memref<256x128xf32, #tpu.memory_space<vmem>>, %arg5: memref<1x128xf32, #tpu.memory_space<vmem>>, %arg6: memref<384x256xf32, #tpu.memory_space<vmem>>, %arg7: memref<1x256xf32, #tpu.memory_space<vmem>>, %arg8: memref<256x128xf32, #tpu.memory_space<vmem>>, %arg9: memref<1x128xf32, #tpu.memory_space<vmem>>, %arg10: memref<3x128xf32, #tpu.memory_space<vmem>>) attributes {dimension_semantics = [], scalar_prefetch = 0 : i64, scratch_operands = 0 : i64, tpu.core_type = #tpu.core_type<tc>} {
    %c0 = arith.constant 0 : index
    %c0_0 = arith.constant 0 : index
    %c0_1 = arith.constant 0 : index
    %0 = vector.load %arg0[%c0, %c0_0, %c0_1] : memref<1x8x384xf32, #tpu.memory_space<vmem>>, vector<1x8x384xf32>
    %1 = vector.shape_cast %0 : vector<1x8x384xf32> to vector<8x384xf32>
    %c0_2 = arith.constant 0 : index
    %c0_3 = arith.constant 0 : index
    %2 = vector.load %arg2[%c0_2, %c0_3] : memref<384x256xf32, #tpu.memory_space<vmem>>, vector<384x256xf32>
    %cst = arith.constant dense<0.000000e+00> : vector<8x256xf32>
    %3 = tpu.matmul %1, %2, %cst {dimension_numbers = #tpu.dot_dimension_numbers<[1], [0], [0], [1], [0, 0, 1, 1], [], []>} : vector<8x384xf32>, vector<384x256xf32>, vector<8x256xf32> -> vector<8x256xf32>
    %c0_4 = arith.constant 0 : index
    %c0_5 = arith.constant 0 : index
    %4 = vector.load %arg3[%c0_4, %c0_5] : memref<1x256xf32, #tpu.memory_space<vmem>>, vector<1x256xf32>
    %5 = vector.broadcast %4 : vector<1x256xf32> to vector<8x256xf32>
    %6 = arith.addf %3, %5 : vector<8x256xf32>
    %7 = math.tanh %6 : vector<8x256xf32>
    %cst_6 = arith.constant dense<0xFF800000> : vector<256xf32>
    %8 = vector.multi_reduction <maximumf>, %7, %cst_6 [0] : vector<8x256xf32> to vector<256xf32>
    %9 = vector.shape_cast %8 : vector<256xf32> to vector<1x256xf32>
    %c0_7 = arith.constant 0 : index
    %c0_8 = arith.constant 0 : index
    %10 = vector.load %arg4[%c0_7, %c0_8] : memref<256x128xf32, #tpu.memory_space<vmem>>, vector<256x128xf32>
    %cst_9 = arith.constant dense<0.000000e+00> : vector<1x128xf32>
    %11 = tpu.matmul %9, %10, %cst_9 {dimension_numbers = #tpu.dot_dimension_numbers<[1], [0], [0], [1], [0, 0, 1, 1], [], []>} : vector<1x256xf32>, vector<256x128xf32>, vector<1x128xf32> -> vector<1x128xf32>
    %c0_10 = arith.constant 0 : index
    %c0_11 = arith.constant 0 : index
    %12 = vector.load %arg5[%c0_10, %c0_11] : memref<1x128xf32, #tpu.memory_space<vmem>>, vector<1x128xf32>
    %13 = arith.addf %11, %12 : vector<1x128xf32>
    %14 = math.tanh %13 : vector<1x128xf32>
    %c0_12 = arith.constant 0 : index
    %c0_13 = arith.constant 0 : index
    %c0_14 = arith.constant 0 : index
    %15 = vector.load %arg1[%c0_12, %c0_13, %c0_14] : memref<4x8x384xf32, #tpu.memory_space<vmem>>, vector<4x8x384xf32>
    %16 = vector.shape_cast %15 : vector<4x8x384xf32> to vector<32x384xf32>
    %c0_15 = arith.constant 0 : index
    %c0_16 = arith.constant 0 : index
    %17 = vector.load %arg6[%c0_15, %c0_16] : memref<384x256xf32, #tpu.memory_space<vmem>>, vector<384x256xf32>
    %cst_17 = arith.constant dense<0.000000e+00> : vector<32x256xf32>
    %18 = tpu.matmul %16, %17, %cst_17 {dimension_numbers = #tpu.dot_dimension_numbers<[1], [0], [0], [1], [0, 0, 1, 1], [], []>} : vector<32x384xf32>, vector<384x256xf32>, vector<32x256xf32> -> vector<32x256xf32>
    %c0_18 = arith.constant 0 : index
    %c0_19 = arith.constant 0 : index
    %19 = vector.load %arg7[%c0_18, %c0_19] : memref<1x256xf32, #tpu.memory_space<vmem>>, vector<1x256xf32>
    %20 = vector.broadcast %19 : vector<1x256xf32> to vector<32x256xf32>
    %21 = arith.addf %18, %20 : vector<32x256xf32>
    %22 = math.tanh %21 : vector<32x256xf32>
    %23 = vector.shape_cast %22 : vector<32x256xf32> to vector<4x8x256xf32>
    %cst_20 = arith.constant dense<0xFF800000> : vector<4x256xf32>
    %24 = vector.multi_reduction <maximumf>, %23, %cst_20 [1] : vector<4x8x256xf32> to vector<4x256xf32>
    %c0_21 = arith.constant 0 : index
    %c0_22 = arith.constant 0 : index
    %25 = vector.load %arg8[%c0_21, %c0_22] : memref<256x128xf32, #tpu.memory_space<vmem>>, vector<256x128xf32>
    %cst_23 = arith.constant dense<0.000000e+00> : vector<4x128xf32>
    %26 = tpu.matmul %24, %25, %cst_23 {dimension_numbers = #tpu.dot_dimension_numbers<[1], [0], [0], [1], [0, 0, 1, 1], [], []>} : vector<4x256xf32>, vector<256x128xf32>, vector<4x128xf32> -> vector<4x128xf32>
    %c0_24 = arith.constant 0 : index
    %c0_25 = arith.constant 0 : index
    %27 = vector.load %arg9[%c0_24, %c0_25] : memref<1x128xf32, #tpu.memory_space<vmem>>, vector<1x128xf32>
    %28 = vector.broadcast %27 : vector<1x128xf32> to vector<4x128xf32>
    %29 = arith.addf %26, %28 : vector<4x128xf32>
    %30 = math.tanh %29 : vector<4x128xf32>
    %31 = vector.extract_strided_slice %30 {offsets = [0, 0], sizes = [1, 128], strides = [1, 1]} : vector<4x128xf32> to vector<1x128xf32>
    %32 = vector.extract_strided_slice %30 {offsets = [1, 0], sizes = [3, 128], strides = [1, 1]} : vector<4x128xf32> to vector<3x128xf32>
    %33 = arith.mulf %14, %31 : vector<1x128xf32>
    %34 = vector.shape_cast %33 : vector<1x128xf32> to vector<1x1x128xf32>
    %cst_26 = arith.constant dense<0.000000e+00> : vector<1xf32>
    %35 = vector.multi_reduction <add>, %34, %cst_26 [1, 2] : vector<1x1x128xf32> to vector<1xf32>
    %36 = vector.shape_cast %35 : vector<1xf32> to vector<1x1x1xf32>
    %37 = vector.extract %36[0, 0, 0] : f32 from vector<1x1x1xf32>
    %38 = vector.broadcast %14 : vector<1x128xf32> to vector<3x128xf32>
    %39 = arith.mulf %38, %32 : vector<3x128xf32>
    %cst_27 = arith.constant dense<0.000000e+00> : vector<3xf32>
    %40 = vector.multi_reduction <add>, %39, %cst_27 [1] : vector<3x128xf32> to vector<3xf32>
    %41 = vector.shape_cast %40 : vector<3xf32> to vector<3x1xf32>
    %42 = vector.shape_cast %41 : vector<3x1xf32> to vector<3x1xf32>
    %43 = vector.broadcast %42 : vector<3x1xf32> to vector<3x128xf32>
    %44 = vector.broadcast %37 : f32 to vector<3x128xf32>
    %45 = arith.addf %44, %43 : vector<3x128xf32>
    %c0_28 = arith.constant 0 : index
    %c0_29 = arith.constant 0 : index
    %46 = vector.load %arg10[%c0_28, %c0_29] : memref<3x128xf32, #tpu.memory_space<vmem>>, vector<3x128xf32>
    tpu.vector_store %arg10[%c0_28, %c0_29], %45 {strides = array<i32>} : memref<3x128xf32, #tpu.memory_space<vmem>>, vector<3x128xf32>,
    return
  }
}

</mosaic_0001>

<llo_original>
// kernel: tpu_custom_call.1
$region0: #{tpu_custom_call.1}
  #allocation0 [shape = 'u32[]', space=smem, size = 0x4, offset = 0x4, fixed_abs, tag = 'smem constant byte address 0x4 - core index']
  #allocation1 [shape = 'u32[144,128]{1,0:T(1,128)}', space=vmem, size = 0x12000, scoped, tag = 'internal scratch']
  %s0 = inlined_call_operand.hbm [shape: f32[1,8,384], index: 0, kind: input, shape index: {}]
  %s1 = inlined_call_operand.hbm [shape: f32[4,8,384], index: 1, kind: input, shape index: {}]
  %s2 = inlined_call_operand.hbm [shape: f32[384,256], index: 2, kind: input, shape index: {}]
  %s3 = inlined_call_operand.vmem [shape: f32[1,256], index: 3, kind: input, shape index: {}]
  %s4 = inlined_call_operand.hbm [shape: f32[256,128], index: 4, kind: input, shape index: {}]
  %s5 = inlined_call_operand.vmem [shape: f32[1,128], index: 5, kind: input, shape index: {}]
  %s6 = inlined_call_operand.hbm [shape: f32[384,256], index: 6, kind: input, shape index: {}]
  %s7 = inlined_call_operand.vmem [shape: f32[1,256], index: 7, kind: input, shape index: {}]
  %s8 = inlined_call_operand.hbm [shape: f32[256,128], index: 8, kind: input, shape index: {}]
  %s9 = inlined_call_operand.vmem [shape: f32[1,128], index: 9, kind: input, shape index: {}]
  %s10 = inlined_call_operand.hbm [shape: f32[3,128], index: 10, kind: output, shape index: {}]
  %s11 = sld [smem:[#allocation0]]
  $region74: #{tpu_custom_call.1} parent=0
    _
  %s13 = ssub.s32 1, %s11
  %s14 = scalar_select 0, %s13, %s11
  $region1: #{tpu_custom_call.1} parent=0
    #allocation2 [shape = 'u8[12288]{0}', space=vmem, size = 0x3000, scoped, tag = 'input window, operand 0, single buffered']
    #allocation3 [shape = 's32[1]{0}', space=sflag, size = 0x4, scoped, tag = 'scoped memory for tpu_custom_call.1']
    #allocation4 [shape = 's32[1]{0}', space=sflag, size = 0x4, scoped, tag = 'scoped memory for tpu_custom_call.1']
    #allocation5 [shape = 'u8[49152]{0}', space=vmem, size = 0xc000, scoped, tag = 'input window, operand 1, single buffered']
    #allocation6 [shape = 's32[1]{0}', space=sflag, size = 0x4, scoped, tag = 'scoped memory for tpu_custom_call.1']
    #allocation7 [shape = 'u8[393216]{0}', space=vmem, size = 0x60000, scoped, tag = 'input window, operand 2, single buffered']
    #allocation8 [shape = 'u8[131072]{0}', space=vmem, size = 0x20000, scoped, tag = 'input window, operand 4, single buffered']
    #allocation9 [shape = 's32[1]{0}', space=sflag, size = 0x4, scoped, tag = 'scoped memory for tpu_custom_call.1']
    #allocation10 [shape = 'u8[393216]{0}', space=vmem, size = 0x60000, scoped, tag = 'input window, operand 6, single buffered']
    #allocation11 [shape = 'u8[131072]{0}', space=vmem, size = 0x20000, scoped, tag = 'input window, operand 8, single buffered']
    #allocation12 [shape = 's32[1]{0}', space=sflag, size = 0x4, scoped, tag = 'scoped memory for tpu_custom_call.1']
    #allocation13 [shape = 'u8[2048]{0}', space=vmem, size = 0x800, scoped, tag = 'output window, operand 0, single buffered']
    %15 = vsyncpa [#allocation3], 0
    %16 = vsyncpa [#allocation6], 0
    %17 = vsyncpa [#allocation9], 0
    %18 = vsyncpa [#allocation12], 0
    %19 = vsyncpa [#allocation4], 0
    // Predicated region
    $region2: #{tpu_custom_call.1} parent=1 // pred_check
      _
    $region3: #{tpu_custom_call.1} parent=1 // pred_check_branch
      %21 = sbr.rel (0) target = $region5
    $region4: #{tpu_custom_call.1} parent=1 // pred_region
      %s23 = ssub.s32 384, 384
      %24 = vsyncadd [#allocation3], %s23
      %s26 = sshll.u32 [#allocation2], 4
      %s27 = int_to_ptr.vmem [resolvable:$true] %s26
      %29 = dma.hbm_to_vmem [thread:$0]  %s0, 384, %s27, [#allocation3]
    $region5: #{tpu_custom_call.1} parent=1 // pred_fallthru
      _
    // Predicated region
    $region6: #{tpu_custom_call.1} parent=1 // pred_check
      _
    $region7: #{tpu_custom_call.1} parent=1 // pred_check_branch
      %31 = sbr.rel (0) target = $region9
    $region8: #{tpu_custom_call.1} parent=1 // pred_region
      %s33 = ssub.s32 1536, 1536
      %34 = vsyncadd [#allocation6], %s33
      %s35 = sshll.u32 [#allocation5], 4
      %s36 = int_to_ptr.vmem [resolvable:$true] %s35
      %41 = dma.hbm_to_vmem [thread:$0]  %s1, 1536, %s36, [#allocation6], 384, 384, 24
    $region9: #{tpu_custom_call.1} parent=1 // pred_fallthru
      _
    // Predicated region
    $region10: #{tpu_custom_call.1} parent=1 // pred_check
      _
    $region11: #{tpu_custom_call.1} parent=1 // pred_check_branch
      %43 = sbr.rel (0) target = $region13
    $region12: #{tpu_custom_call.1} parent=1 // pred_region
      %s45 = ssub.s32 12288, 12288
      %46 = vsyncadd [#allocation6], %s45
      %s47 = sshll.u32 [#allocation7], 4
      %s48 = int_to_ptr.vmem [resolvable:$true] %s47
      %53 = dma.hbm_to_vmem [thread:$0]  %s2, 12288, %s48, [#allocation6], 256, 256, 16
    $region13: #{tpu_custom_call.1} parent=1 // pred_fallthru
      _
    // Predicated region
    $region14: #{tpu_custom_call.1} parent=1 // pred_check
      _
    $region15: #{tpu_custom_call.1} parent=1 // pred_check_branch
      %55 = sbr.rel (0) target = $region17
    $region16: #{tpu_custom_call.1} parent=1 // pred_region
      _
    $region17: #{tpu_custom_call.1} parent=1 // pred_fallthru
      _
    // Predicated region
    $region18: #{tpu_custom_call.1} parent=1 // pred_check
      _
    $region19: #{tpu_custom_call.1} parent=1 // pred_check_branch
      %57 = sbr.rel (0) target = $region21
    $region20: #{tpu_custom_call.1} parent=1 // pred_region
      %s59 = ssub.s32 4096, 4096
      %60 = vsyncadd [#allocation9], %s59
      %s61 = sshll.u32 [#allocation8], 4
      %s62 = int_to_ptr.vmem [resolvable:$true] %s61
      %67 = dma.hbm_to_vmem [thread:$0]  %s4, 4096, %s62, [#allocation9], 128, 128, 8
    $region21: #{tpu_custom_call.1} parent=1 // pred_fallthru
      _
    // Predicated region
    $region22: #{tpu_custom_call.1} parent=1 // pred_check
      _
    $region23: #{tpu_custom_call.1} parent=1 // pred_check_branch
      %69 = sbr.rel (0) target = $region25
    $region24: #{tpu_custom_call.1} parent=1 // pred_region
      _
    $region25: #{tpu_custom_call.1} parent=1 // pred_fallthru
      _
    // Predicated region
    $region26: #{tpu_custom_call.1} parent=1 // pred_check
      _
    $region27: #{tpu_custom_call.1} parent=1 // pred_check_branch
      %71 = sbr.rel (0) target = $region29
    $region28: #{tpu_custom_call.1} parent=1 // pred_region
      %s73 = ssub.s32 12288, 12288
      %74 = vsyncadd [#allocation9], %s73
      %s75 = sshll.u32 [#allocation10], 4
      %s76 = int_to_ptr.vmem [resolvable:$true] %s75
      %81 = dma.hbm_to_vmem [thread:$0]  %s6, 12288, %s76, [#allocation9], 256, 256, 16
    $region29: #{tpu_custom_call.1} parent=1 // pred_fallthru
      _
    // Predicated region
    $region30: #{tpu_custom_call.1} parent=1 // pred_check
      _
    $region31: #{tpu_custom_call.1} parent=1 // pred_check_branch
      %83 = sbr.rel (0) target = $region33
    $region32: #{tpu_custom_call.1} parent=1 // pred_region
      _
    $region33: #{tpu_custom_call.1} parent=1 // pred_fallthru
      _
    // Predicated region
    $region34: #{tpu_custom_call.1} parent=1 // pred_check
      _
    $region35: #{tpu_custom_call.1} parent=1 // pred_check_branch
      %85 = sbr.rel (0) target = $region37
    $region36: #{tpu_custom_call.1} parent=1 // pred_region
      %s87 = ssub.s32 4096, 4096
      %88 = vsyncadd [#allocation12], %s87
      %s89 = sshll.u32 [#allocation11], 4
      %s90 = int_to_ptr.vmem [resolvable:$true] %s89
      %95 = dma.hbm_to_vmem [thread:$0]  %s8, 4096, %s90, [#allocation12], 128, 128, 8
    $region37: #{tpu_custom_call.1} parent=1 // pred_fallthru
      _
    // Predicated region
    $region38: #{tpu_custom_call.1} parent=1 // pred_check
      _
    $region39: #{tpu_custom_call.1} parent=1 // pred_check_branch
      %97 = sbr.rel (0) target = $region41
    $region40: #{tpu_custom_call.1} parent=1 // pred_region
      _
    $region41: #{tpu_custom_call.1} parent=1 // pred_fallthru
      _
    // Predicated region
    $region42: #{tpu_custom_call.1} parent=1 // pred_check
      _
    $region43: #{tpu_custom_call.1} parent=1 // pred_check_branch
      %99 = sbr.rel (0) target = $region45
    $region44: #{tpu_custom_call.1} parent=1 // pred_region
      %100 = dma.done [#allocation3], 384
    $region45: #{tpu_custom_call.1} parent=1 // pred_fallthru
      _
    // Predicated region
    $region46: #{tpu_custom_call.1} parent=1 // pred_check
      _
    $region47: #{tpu_custom_call.1} parent=1 // pred_check_branch
      %102 = sbr.rel (0) target = $region49
    $region48: #{tpu_custom_call.1} parent=1 // pred_region
      %103 = dma.done [#allocation6], 1536
    $region49: #{tpu_custom_call.1} parent=1 // pred_fallthru
      _
    // Predicated region
    $region50: #{tpu_custom_call.1} parent=1 // pred_check
      _
    $region51: #{tpu_custom_call.1} parent=1 // pred_check_branch
      %105 = sbr.rel (0) target = $region53
    $region52: #{tpu_custom_call.1} parent=1 // pred_region
      %106 = dma.done [#allocation6], 12288
    $region53: #{tpu_custom_call.1} parent=1 // pred_fallthru
      _
    // Predicated region
    $region54: #{tpu_custom_call.1} parent=1 // pred_check
      _
    $region55: #{tpu_custom_call.1} parent=1 // pred_check_branch
      %108 = sbr.rel (0) target = $region57
    $region56: #{tpu_custom_call.1} parent=1 // pred_region
      %109 = dma.done [#allocation9], 4096
    $region57: #{tpu_custom_call.1} parent=1 // pred_fallthru
      _
    // Predicated region
    $region58: #{tpu_custom_call.1} parent=1 // pred_check
      _
    $region59: #{tpu_custom_call.1} parent=1 // pred_check_branch
      %111 = sbr.rel (0) target = $region61
    $region60: #{tpu_custom_call.1} parent=1 // pred_region
      %112 = dma.done [#allocation9], 12288
    $region61: #{tpu_custom_call.1} parent=1 // pred_fallthru
      _
    // Predicated region
    $region62: #{tpu_custom_call.1} parent=1 // pred_check
      _
    $region63: #{tpu_custom_call.1} parent=1 // pred_check_branch
      %114 = sbr.rel (0) target = $region65
    $region64: #{tpu_custom_call.1} parent=1 // pred_region
      %115 = dma.done [#allocation12], 4096
    $region65: #{tpu_custom_call.1} parent=1 // pred_fallthru
      _
    %v116 = vld [vmem:[#allocation2] sm:$0xff]
    %v117 = vld [vmem:[#allocation2 + $0x8] sm:$0xff]
    %v118 = vld [vmem:[#allocation2 + $0x10] sm:$0xff]
    %v119 = vld [vmem:[#allocation7] sm:$0xff]
    %v120 = vld [vmem:[#allocation7 + $0x8] sm:$0xff]
    %v121 = vld [vmem:[#allocation7 + $0x10] sm:$0xff]
    %v122 = vld [vmem:[#allocation7 + $0x18] sm:$0xff]
    %v123 = vld [vmem:[#allocation7 + $0x20] sm:$0xff]
    %v124 = vld [vmem:[#allocation7 + $0x28] sm:$0xff]
    %v125 = vld [vmem:[#allocation7 + $0x30] sm:$0xff]
    %v126 = vld [vmem:[#allocation7 + $0x38] sm:$0xff]
    %v127 = vld [vmem:[#allocation7 + $0x40] sm:$0xff]
    %v128 = vld [vmem:[#allocation7 + $0x48] sm:$0xff]
    %v129 = vld [vmem:[#allocation7 + $0x50] sm:$0xff]
    %v130 = vld [vmem:[#allocation7 + $0x58] sm:$0xff]
    %v131 = vld [vmem:[#allocation7 + $0x60] sm:$0xff]
    %v132 = vld [vmem:[#allocation7 + $0x68] sm:$0xff]
    %v133 = vld [vmem:[#allocation7 + $0x70] sm:$0xff]
    %v134 = vld [vmem:[#allocation7 + $0x78] sm:$0xff]
    %v135 = vld [vmem:[#allocation7 + $0x80] sm:$0xff]
    %v136 = vld [vmem:[#allocation7 + $0x88] sm:$0xff]
    %v137 = vld [vmem:[#allocation7 + $0x90] sm:$0xff]
    %v138 = vld [vmem:[#allocation7 + $0x98] sm:$0xff]
    %v139 = vld [vmem:[#allocation7 + $0xa0] sm:$0xff]
    %v140 = vld [vmem:[#allocation7 + $0xa8] sm:$0xff]
    %v141 = vld [vmem:[#allocation7 + $0xb0] sm:$0xff]
    %v142 = vld [vmem:[#allocation7 + $0xb8] sm:$0xff]
    %v143 = vld [vmem:[#allocation7 + $0xc0] sm:$0xff]
    %v144 = vld [vmem:[#allocation7 + $0xc8] sm:$0xff]
    %v145 = vld [vmem:[#allocation7 + $0xd0] sm:$0xff]
    %v146 = vld [vmem:[#allocation7 + $0xd8] sm:$0xff]
    %v147 = vld [vmem:[#allocation7 + $0xe0] sm:$0xff]
    %v148 = vld [vmem:[#allocation7 + $0xe8] sm:$0xff]
    %v149 = vld [vmem:[#allocation7 + $0xf0] sm:$0xff]
    %v150 = vld [vmem:[#allocation7 + $0xf8] sm:$0xff]
    %v151 = vld [vmem:[#allocation7 + $0x100] sm:$0xff]
    %v152 = vld [vmem:[#allocation7 + $0x108] sm:$0xff]
    %v153 = vld [vmem:[#allocation7 + $0x110] sm:$0xff]
    %v154 = vld [vmem:[#allocation7 + $0x118] sm:$0xff]
    %v155 = vld [vmem:[#allocation7 + $0x120] sm:$0xff]
    %v156 = vld [vmem:[#allocation7 + $0x128] sm:$0xff]
    %v157 = vld [vmem:[#allocation7 + $0x130] sm:$0xff]
    %v158 = vld [vmem:[#allocation7 + $0x138] sm:$0xff]
    %v159 = vld [vmem:[#allocation7 + $0x140] sm:$0xff]
    %v160 = vld [vmem:[#allocation7 + $0x148] sm:$0xff]
    %v161 = vld [vmem:[#allocation7 + $0x150] sm:$0xff]
    %v162 = vld [vmem:[#allocation7 + $0x158] sm:$0xff]
    %v163 = vld [vmem:[#allocation7 + $0x160] sm:$0xff]
    %v164 = vld [vmem:[#allocation7 + $0x168] sm:$0xff]
    %v165 = vld [vmem:[#allocation7 + $0x170] sm:$0xff]
    %v166 = vld [vmem:[#allocation7 + $0x178] sm:$0xff]
    %v167 = vld [vmem:[#allocation7 + $0x180] sm:$0xff]
    %v168 = vld [vmem:[#allocation7 + $0x188] sm:$0xff]
    %v169 = vld [vmem:[#allocation7 + $0x190] sm:$0xff]
    %v170 = vld [vmem:[#allocation7 + $0x198] sm:$0xff]
    %v171 = vld [vmem:[#allocation7 + $0x1a0] sm:$0xff]
    %v172 = vld [vmem:[#allocation7 + $0x1a8] sm:$0xff]
    %v173 = vld [vmem:[#allocation7 + $0x1b0] sm:$0xff]
    %v174 = vld [vmem:[#allocation7 + $0x1b8] sm:$0xff]
    %v175 = vld [vmem:[#allocation7 + $0x1c0] sm:$0xff]
    %v176 = vld [vmem:[#allocation7 + $0x1c8] sm:$0xff]
    %v177 = vld [vmem:[#allocation7 + $0x1d0] sm:$0xff]
    %v178 = vld [vmem:[#allocation7 + $0x1d8] sm:$0xff]
    %v179 = vld [vmem:[#allocation7 + $0x1e0] sm:$0xff]
    %v180 = vld [vmem:[#allocation7 + $0x1e8] sm:$0xff]
    %v181 = vld [vmem:[#allocation7 + $0x1f0] sm:$0xff]
    %v182 = vld [vmem:[#allocation7 + $0x1f8] sm:$0xff]
    %v183 = vld [vmem:[#allocation7 + $0x200] sm:$0xff]
    %v184 = vld [vmem:[#allocation7 + $0x208] sm:$0xff]
    %v185 = vld [vmem:[#allocation7 + $0x210] sm:$0xff]
    %v186 = vld [vmem:[#allocation7 + $0x218] sm:$0xff]
    %v187 = vld [vmem:[#allocation7 + $0x220] sm:$0xff]
    %v188 = vld [vmem:[#allocation7 + $0x228] sm:$0xff]
    %v189 = vld [vmem:[#allocation7 + $0x230] sm:$0xff]
    %v190 = vld [vmem:[#allocation7 + $0x238] sm:$0xff]
    %v191 = vld [vmem:[#allocation7 + $0x240] sm:$0xff]
    %v192 = vld [vmem:[#allocation7 + $0x248] sm:$0xff]
    %v193 = vld [vmem:[#allocation7 + $0x250] sm:$0xff]
    %v194 = vld [vmem:[#allocation7 + $0x258] sm:$0xff]
    %v195 = vld [vmem:[#allocation7 + $0x260] sm:$0xff]
    %v196 = vld [vmem:[#allocation7 + $0x268] sm:$0xff]
    %v197 = vld [vmem:[#allocation7 + $0x270] sm:$0xff]
    %v198 = vld [vmem:[#allocation7 + $0x278] sm:$0xff]
    %v199 = vld [vmem:[#allocation7 + $0x280] sm:$0xff]
    %v200 = vld [vmem:[#allocation7 + $0x288] sm:$0xff]
    %v201 = vld [vmem:[#allocation7 + $0x290] sm:$0xff]
    %v202 = vld [vmem:[#allocation7 + $0x298] sm:$0xff]
    %v203 = vld [vmem:[#allocation7 + $0x2a0] sm:$0xff]
    %v204 = vld [vmem:[#allocation7 + $0x2a8] sm:$0xff]
    %v205 = vld [vmem:[#allocation7 + $0x2b0] sm:$0xff]
    %v206 = vld [vmem:[#allocation7 + $0x2b8] sm:$0xff]
    %v207 = vld [vmem:[#allocation7 + $0x2c0] sm:$0xff]
    %v208 = vld [vmem:[#allocation7 + $0x2c8] sm:$0xff]
    %v209 = vld [vmem:[#allocation7 + $0x2d0] sm:$0xff]
    %v210 = vld [vmem:[#allocation7 + $0x2d8] sm:$0xff]
    %v211 = vld [vmem:[#allocation7 + $0x2e0] sm:$0xff]
    %v212 = vld [vmem:[#allocation7 + $0x2e8] sm:$0xff]
    %v213 = vld [vmem:[#allocation7 + $0x2f0] sm:$0xff]
    %v214 = vld [vmem:[#allocation7 + $0x2f8] sm:$0xff]
    %v215 = vld [vmem:[%s3] sm:$0x3]
    %v217 = vlaneseq
    %v218 = vshrl.u32 %v217, 7
    %v219 = vsub.s32 0, %v218
    %v220 = vrot.slane %v215, %v219
    %v221 = vlaneseq
    %v222 = vshrl.u32 %v221, 7
    %v223 = vsub.s32 1, %v222
    %v224 = vrot.slane %v215, %v223
    %227 = vmatprep.subr.mxu0 %v150
    %228 = vmatpush1.msra.mxu0 %v149
    %229 = vmatprep.subr.mxu0 %v148
    %230 = vmatpush1.msra.mxu0 %v147
    %231 = vmatprep.subr.mxu0 %v146
    %232 = vmatpush1.msra.mxu0 %v145
    %233 = vmatprep.subr.mxu0 %v144
    %234 = vmatpush1.msra.mxu0 %v143
    %235 = vmatprep.subr.mxu0 %v142
    %236 = vmatpush1.msra.mxu0 %v141
    %237 = vmatprep.subr.mxu0 %v140
    %238 = vmatpush1.msra.mxu0 %v139
    %239 = vmatprep.subr.mxu0 %v138
    %240 = vmatpush1.msra.mxu0 %v137
    %241 = vmatprep.subr.mxu0 %v136
    %242 = vmatpush1.msra.mxu0 %v135
    %243 = vmatprep.subr.mxu0 %v134
    %244 = vmatpush1.msra.mxu0 %v133
    %245 = vmatprep.subr.mxu0 %v132
    %246 = vmatpush1.msra.mxu0 %v131
    %247 = vmatprep.subr.mxu0 %v130
    %248 = vmatpush1.msra.mxu0 %v129
    %249 = vmatprep.subr.mxu0 %v128
    %250 = vmatpush1.msra.mxu0 %v127
    %251 = vmatprep.subr.mxu0 %v126
    %252 = vmatpush1.msra.mxu0 %v125
    %253 = vmatprep.subr.mxu0 %v124
    %254 = vmatpush1.msra.mxu0 %v123
    %255 = vmatprep.subr.mxu0 %v122
    %256 = vmatpush1.msra.mxu0 %v121
    %257 = vmatprep.subr.mxu0 %v120
    %258 = vmatpush1.msra.mxu0 %v119
    %259 = vmatprep.subr.mxu0 %v182
    %260 = vmatpush2.msra.mxu0 %v181
    %261 = vmatprep.subr.mxu0 %v180
    %262 = vmatpush2.msra.mxu0 %v179
    %263 = vmatprep.subr.mxu0 %v178
    %264 = vmatpush2.msra.mxu0 %v177
    %265 = vmatprep.subr.mxu0 %v176
    %266 = vmatpush2.msra.mxu0 %v175
    %267 = vmatprep.subr.mxu0 %v174
    %268 = vmatpush2.msra.mxu0 %v173
    %269 = vmatprep.subr.mxu0 %v172
    %270 = vmatpush2.msra.mxu0 %v171
    %271 = vmatprep.subr.mxu0 %v170
    %272 = vmatpush2.msra.mxu0 %v169
    %273 = vmatprep.subr.mxu0 %v168
    %274 = vmatpush2.msra.mxu0 %v167
    %275 = vmatprep.subr.mxu0 %v166
    %276 = vmatpush2.msra.mxu0 %v165
    %277 = vmatprep.subr.mxu0 %v164
    %278 = vmatpush2.msra.mxu0 %v163
    %279 = vmatprep.subr.mxu0 %v162
    %280 = vmatpush2.msra.mxu0 %v161
    %281 = vmatprep.subr.mxu0 %v160
    %282 = vmatpush2.msra.mxu0 %v159
    %283 = vmatprep.subr.mxu0 %v158
    %284 = vmatpush2.msra.mxu0 %v157
    %285 = vmatprep.subr.mxu0 %v156
    %286 = vmatpush2.msra.mxu0 %v155
    %287 = vmatprep.subr.mxu0 %v154
    %288 = vmatpush2.msra.mxu0 %v153
    %289 = vmatprep.subr.mxu0 %v152
    %290 = vmatpush2.msra.mxu0 %v151
    %291 = vmatprep.mubr.f32.mxu0 %v117
    %292 = vmatmul.mubr.f32.gmra.mxu0 %v116
    %v293 = vpop.f32.mrf.mxu0
    %v294 = vadd.f32 %v220, %v293
    %v295 = vpop.f32.mrf.mxu0
    %v296 = vadd.f32 %v224, %v295
    %297 = vdwg.mxu0
    %298 = vmatprep.subr.mxu0 %v214
    %299 = vmatpush1.msra.mxu0 %v213
    %300 = vmatprep.subr.mxu0 %v212
    %301 = vmatpush1.msra.mxu0 %v211
    %302 = vmatprep.subr.mxu0 %v210
    %303 = vmatpush1.msra.mxu0 %v209
    %304 = vmatprep.subr.mxu0 %v208
    %305 = vmatpush1.msra.mxu0 %v207
    %306 = vmatprep.subr.mxu0 %v206
    %307 = vmatpush1.msra.mxu0 %v205
    %308 = vmatprep.subr.mxu0 %v204
    %309 = vmatpush1.msra.mxu0 %v203
    %310 = vmatprep.subr.mxu0 %v202
    %311 = vmatpush1.msra.mxu0 %v201
    %312 = vmatprep.subr.mxu0 %v200
    %313 = vmatpush1.msra.mxu0 %v199
    %314 = vmatprep.subr.mxu0 %v198
    %315 = vmatpush1.msra.mxu0 %v197
    %316 = vmatprep.subr.mxu0 %v196
    %317 = vmatpush1.msra.mxu0 %v195
    %318 = vmatprep.subr.mxu0 %v194
    %319 = vmatpush1.msra.mxu0 %v193
    %320 = vmatprep.subr.mxu0 %v192
    %321 = vmatpush1.msra.mxu0 %v191
    %322 = vmatprep.subr.mxu0 %v190
    %323 = vmatpush1.msra.mxu0 %v189
    %324 = vmatprep.subr.mxu0 %v188
    %325 = vmatpush1.msra.mxu0 %v187
    %326 = vmatprep.subr.mxu0 %v186
    %327 = vmatpush1.msra.mxu0 %v185
    %328 = vmatprep.subr.mxu0 %v184
    %329 = vmatpush1.msra.mxu0 %v183
    %330 = vmatprep.subr.mxu0 0.0
    %331 = vmatpush2.msra.mxu0 0.0
    %332 = vmatprep.subr.mxu0 0.0
    %333 = vmatpush2.msra.mxu0 0.0
    %334 = vmatprep.subr.mxu0 0.0
    %335 = vmatpush2.msra.mxu0 0.0
    %336 = vmatprep.subr.mxu0 0.0
    %337 = vmatpush2.msra.mxu0 0.0
    %338 = vmatprep.subr.mxu0 0.0
    %339 = vmatpush2.msra.mxu0 0.0
    %340 = vmatprep.subr.mxu0 0.0
    %341 = vmatpush2.msra.mxu0 0.0
    %342 = vmatprep.subr.mxu0 0.0
    %343 = vmatpush2.msra.mxu0 0.0
    %344 = vmatprep.subr.mxu0 0.0
    %345 = vmatpush2.msra.mxu0 0.0
    %346 = vmatprep.subr.mxu0 0.0
    %347 = vmatpush2.msra.mxu0 0.0
    %348 = vmatprep.subr.mxu0 0.0
    %349 = vmatpush2.msra.mxu0 0.0
    %350 = vmatprep.subr.mxu0 0.0
    %351 = vmatpush2.msra.mxu0 0.0
    %352 = vmatprep.subr.mxu0 0.0
    %353 = vmatpush2.msra.mxu0 0.0
    %354 = vmatprep.subr.mxu0 0.0
    %355 = vmatpush2.msra.mxu0 0.0
    %356 = vmatprep.subr.mxu0 0.0
    %357 = vmatpush2.msra.mxu0 0.0
    %358 = vmatprep.subr.mxu0 0.0
    %359 = vmatpush2.msra.mxu0 0.0
    %360 = vmatprep.subr.mxu0 0.0
    %361 = vmatpush2.msra.mxu0 0.0
    %362 = vmatprep.mubr.f32.mxu0 0.0
    %363 = vmatmul.mubr.f32.gmra.mxu0 %v118
    %v364 = vpop.f32.mrf.mxu0
    %v365 = vadd.f32 %v294, %v364
    %v366 = vpop.f32.mrf.mxu0
    %v367 = vadd.f32 %v296, %v366
    %368 = vdwg.mxu0
    %v369 = vtanh.pop %v365
    %v370 = vtanh.pop %v367
    %v371 = vrot.slane %v369, 4
    %v372 = vmax.f32 %v369, %v371
    %v373 = vrot.slane %v372, 2
    %v374 = vmax.f32 %v372, %v373
    %v375 = vrot.slane %v374, 1
    %v376 = vmax.f32 %v374, %v375
    %v377 = vrot.slane %v370, 4
    %v378 = vmax.f32 %v370, %v377
    %v379 = vrot.slane %v378, 2
    %v380 = vmax.f32 %v378, %v379
    %v381 = vrot.slane %v380, 1
    %v382 = vmax.f32 %v380, %v381
    %v383 = vld [vmem:[#allocation8] sm:$0xff]
    %v384 = vld [vmem:[#allocation8 + $0x8] sm:$0xff]
    %v385 = vld [vmem:[#allocation8 + $0x10] sm:$0xff]
    %v386 = vld [vmem:[#allocation8 + $0x18] sm:$0xff]
    %v387 = vld [vmem:[#allocation8 + $0x20] sm:$0xff]
    %v388 = vld [vmem:[#allocation8 + $0x28] sm:$0xff]
    %v389 = vld [vmem:[#allocation8 + $0x30] sm:$0xff]
    %v390 = vld [vmem:[#allocation8 + $0x38] sm:$0xff]
    %v391 = vld [vmem:[#allocation8 + $0x40] sm:$0xff]
    %v392 = vld [vmem:[#allocation8 + $0x48] sm:$0xff]
    %v393 = vld [vmem:[#allocation8 + $0x50] sm:$0xff]
    %v394 = vld [vmem:[#allocation8 + $0x58] sm:$0xff]
    %v395 = vld [vmem:[#allocation8 + $0x60] sm:$0xff]
    %v396 = vld [vmem:[#allocation8 + $0x68] sm:$0xff]
    %v397 = vld [vmem:[#allocation8 + $0x70] sm:$0xff]
    %v398 = vld [vmem:[#allocation8 + $0x78] sm:$0xff]
    %v399 = vld [vmem:[#allocation8 + $0x80] sm:$0xff]
    %v400 = vld [vmem:[#allocation8 + $0x88] sm:$0xff]
    %v401 = vld [vmem:[#allocation8 + $0x90] sm:$0xff]
    %v402 = vld [vmem:[#allocation8 + $0x98] sm:$0xff]
    %v403 = vld [vmem:[#allocation8 + $0xa0] sm:$0xff]
    %v404 = vld [vmem:[#allocation8 + $0xa8] sm:$0xff]
    %v405 = vld [vmem:[#allocation8 + $0xb0] sm:$0xff]
    %v406 = vld [vmem:[#allocation8 + $0xb8] sm:$0xff]
    %v407 = vld [vmem:[#allocation8 + $0xc0] sm:$0xff]
    %v408 = vld [vmem:[#allocation8 + $0xc8] sm:$0xff]
    %v409 = vld [vmem:[#allocation8 + $0xd0] sm:$0xff]
    %v410 = vld [vmem:[#allocation8 + $0xd8] sm:$0xff]
    %v411 = vld [vmem:[#allocation8 + $0xe0] sm:$0xff]
    %v412 = vld [vmem:[#allocation8 + $0xe8] sm:$0xff]
    %v413 = vld [vmem:[#allocation8 + $0xf0] sm:$0xff]
    %v414 = vld [vmem:[#allocation8 + $0xf8] sm:$0xff]
    %v415 = vld [vmem:[%s5] sm:$0x1]
    %416 = vmatprep.subr.mxu0 0.0
    %417 = vmatpush1.msra.mxu0 %v398
    %418 = vmatprep.subr.mxu0 0.0
    %419 = vmatpush1.msra.mxu0 %v397
    %420 = vmatprep.subr.mxu0 0.0
    %421 = vmatpush1.msra.mxu0 %v396
    %422 = vmatprep.subr.mxu0 0.0
    %423 = vmatpush1.msra.mxu0 %v395
    %424 = vmatprep.subr.mxu0 0.0
    %425 = vmatpush1.msra.mxu0 %v394
    %426 = vmatprep.subr.mxu0 0.0
    %427 = vmatpush1.msra.mxu0 %v393
    %428 = vmatprep.subr.mxu0 0.0
    %429 = vmatpush1.msra.mxu0 %v392
    %430 = vmatprep.subr.mxu0 0.0
    %431 = vmatpush1.msra.mxu0 %v391
    %432 = vmatprep.subr.mxu0 0.0
    %433 = vmatpush1.msra.mxu0 %v390
    %434 = vmatprep.subr.mxu0 0.0
    %435 = vmatpush1.msra.mxu0 %v389
    %436 = vmatprep.subr.mxu0 0.0
    %437 = vmatpush1.msra.mxu0 %v388
    %438 = vmatprep.subr.mxu0 0.0
    %439 = vmatpush1.msra.mxu0 %v387
    %440 = vmatprep.subr.mxu0 0.0
    %441 = vmatpush1.msra.mxu0 %v386
    %442 = vmatprep.subr.mxu0 0.0
    %443 = vmatpush1.msra.mxu0 %v385
    %444 = vmatprep.subr.mxu0 0.0
    %445 = vmatpush1.msra.mxu0 %v384
    %446 = vmatprep.subr.mxu0 0.0
    %447 = vmatpush1.msra.mxu0 %v383
    %448 = vmatprep.subr.mxu0 0.0
    %449 = vmatpush2.msra.mxu0 %v414
    %450 = vmatprep.subr.mxu0 0.0
    %451 = vmatpush2.msra.mxu0 %v413
    %452 = vmatprep.subr.mxu0 0.0
    %453 = vmatpush2.msra.mxu0 %v412
    %454 = vmatprep.subr.mxu0 0.0
    %455 = vmatpush2.msra.mxu0 %v411
    %456 = vmatprep.subr.mxu0 0.0
    %457 = vmatpush2.msra.mxu0 %v410
    %458 = vmatprep.subr.mxu0 0.0
    %459 = vmatpush2.msra.mxu0 %v409
    %460 = vmatprep.subr.mxu0 0.0
    %461 = vmatpush2.msra.mxu0 %v408
    %462 = vmatprep.subr.mxu0 0.0
    %463 = vmatpush2.msra.mxu0 %v407
    %464 = vmatprep.subr.mxu0 0.0
    %465 = vmatpush2.msra.mxu0 %v406
    %466 = vmatprep.subr.mxu0 0.0
    %467 = vmatpush2.msra.mxu0 %v405
    %468 = vmatprep.subr.mxu0 0.0
    %469 = vmatpush2.msra.mxu0 %v404
    %470 = vmatprep.subr.mxu0 0.0
    %471 = vmatpush2.msra.mxu0 %v403
    %472 = vmatprep.subr.mxu0 0.0
    %473 = vmatpush2.msra.mxu0 %v402
    %474 = vmatprep.subr.mxu0 0.0
    %475 = vmatpush2.msra.mxu0 %v401
    %476 = vmatprep.subr.mxu0 0.0
    %477 = vmatpush2.msra.mxu0 %v400
    %478 = vmatprep.subr.mxu0 0.0
    %479 = vmatpush2.msra.mxu0 %v399
    %480 = vmatprep.mubr.f32.mxu0 %v382
    %481 = vmatmul.mubr.f32.gmra.mxu0 %v376
    %v482 = vpop.f32.mrf.mxu0
    %v483 = vadd.f32 %v415, %v482
    %v484 = vpop.f32.mrf.mxu0
    %485 = vdwg.mxu0
    %v486 = vtanh.pop %v483
    %v487 = vld [vmem:[#allocation5] sm:$0xff]
    %v488 = vld [vmem:[#allocation5 + $0x8] sm:$0xff]
    %v489 = vld [vmem:[#allocation5 + $0x10] sm:$0xff]
    %v490 = vld [vmem:[#allocation5 + $0x18] sm:$0xff]
    %v491 = vld [vmem:[#allocation5 + $0x20] sm:$0xff]
    %v492 = vld [vmem:[#allocation5 + $0x28] sm:$0xff]
    %v493 = vld [vmem:[#allocation5 + $0x30] sm:$0xff]
    %v494 = vld [vmem:[#allocation5 + $0x38] sm:$0xff]
    %v495 = vld [vmem:[#allocation5 + $0x40] sm:$0xff]
    %v496 = vld [vmem:[#allocation5 + $0x48] sm:$0xff]
    %v497 = vld [vmem:[#allocation5 + $0x50] sm:$0xff]
    %v498 = vld [vmem:[#allocation5 + $0x58] sm:$0xff]
    %v499 = vld [vmem:[#allocation10] sm:$0xff]
    %v500 = vld [vmem:[#allocation10 + $0x8] sm:$0xff]
    %v501 = vld [vmem:[#allocation10 + $0x10] sm:$0xff]
    %v502 = vld [vmem:[#allocation10 + $0x18] sm:$0xff]
    %v503 = vld [vmem:[#allocation10 + $0x20] sm:$0xff]
    %v504 = vld [vmem:[#allocation10 + $0x28] sm:$0xff]
    %v505 = vld [vmem:[#allocation10 + $0x30] sm:$0xff]
    %v506 = vld [vmem:[#allocation10 + $0x38] sm:$0xff]
    %v507 = vld [vmem:[#allocation10 + $0x40] sm:$0xff]
    %v508 = vld [vmem:[#allocation10 + $0x48] sm:$0xff]
    %v509 = vld [vmem:[#allocation10 + $0x50] sm:$0xff]
    %v510 = vld [vmem:[#allocation10 + $0x58] sm:$0xff]
    %v511 = vld [vmem:[#allocation10 + $0x60] sm:$0xff]
    %v512 = vld [vmem:[#allocation10 + $0x68] sm:$0xff]
    %v513 = vld [vmem:[#allocation10 + $0x70] sm:$0xff]
    %v514 = vld [vmem:[#allocation10 + $0x78] sm:$0xff]
    %v515 = vld [vmem:[#allocation10 + $0x80] sm:$0xff]
    %v516 = vld [vmem:[#allocation10 + $0x88] sm:$0xff]
    %v517 = vld [vmem:[#allocation10 + $0x90] sm:$0xff]
    %v518 = vld [vmem:[#allocation10 + $0x98] sm:$0xff]
    %v519 = vld [vmem:[#allocation10 + $0xa0] sm:$0xff]
    %v520 = vld [vmem:[#allocation10 + $0xa8] sm:$0xff]
    %v521 = vld [vmem:[#allocation10 + $0xb0] sm:$0xff]
    %v522 = vld [vmem:[#allocation10 + $0xb8] sm:$0xff]
    %v523 = vld [vmem:[#allocation10 + $0xc0] sm:$0xff]
    %v524 = vld [vmem:[#allocation10 + $0xc8] sm:$0xff]
    %v525 = vld [vmem:[#allocation10 + $0xd0] sm:$0xff]
    %v526 = vld [vmem:[#allocation10 + $0xd8] sm:$0xff]
    %v527 = vld [vmem:[#allocation10 + $0xe0] sm:$0xff]
    %v528 = vld [vmem:[#allocation10 + $0xe8] sm:$0xff]
    %v529 = vld [vmem:[#allocation10 + $0xf0] sm:$0xff]
    %v530 = vld [vmem:[#allocation10 + $0xf8] sm:$0xff]
    %v531 = vld [vmem:[#allocation10 + $0x100] sm:$0xff]
    %v532 = vld [vmem:[#allocation10 + $0x108] sm:$0xff]
    %v533 = vld [vmem:[#allocation10 + $0x110] sm:$0xff]
    %v534 = vld [vmem:[#allocation10 + $0x118] sm:$0xff]
    %v535 = vld [vmem:[#allocation10 + $0x120] sm:$0xff]
    %v536 = vld [vmem:[#allocation10 + $0x128] sm:$0xff]
    %v537 = vld [vmem:[#allocation10 + $0x130] sm:$0xff]
    %v538 = vld [vmem:[#allocation10 + $0x138] sm:$0xff]
    %v539 = vld [vmem:[#allocation10 + $0x140] sm:$0xff]
    %v540 = vld [vmem:[#allocation10 + $0x148] sm:$0xff]
    %v541 = vld [vmem:[#allocation10 + $0x150] sm:$0xff]
    %v542 = vld [vmem:[#allocation10 + $0x158] sm:$0xff]
    %v543 = vld [vmem:[#allocation10 + $0x160] sm:$0xff]
    %v544 = vld [vmem:[#allocation10 + $0x168] sm:$0xff]
    %v545 = vld [vmem:[#allocation10 + $0x170] sm:$0xff]
    %v546 = vld [vmem:[#allocation10 + $0x178] sm:$0xff]
    %v547 = vld [vmem:[#allocation10 + $0x180] sm:$0xff]
    %v548 = vld [vmem:[#allocation10 + $0x188] sm:$0xff]
    %v549 = vld [vmem:[#allocation10 + $0x190] sm:$0xff]
    %v550 = vld [vmem:[#allocation10 + $0x198] sm:$0xff]
    %v551 = vld [vmem:[#allocation10 + $0x1a0] sm:$0xff]
    %v552 = vld [vmem:[#allocation10 + $0x1a8] sm:$0xff]
    %v553 = vld [vmem:[#allocation10 + $0x1b0] sm:$0xff]
    %v554 = vld [vmem:[#allocation10 + $0x1b8] sm:$0xff]
    %v555 = vld [vmem:[#allocation10 + $0x1c0] sm:$0xff]
    %v556 = vld [vmem:[#allocation10 + $0x1c8] sm:$0xff]
    %v557 = vld [vmem:[#allocation10 + $0x1d0] sm:$0xff]
    %v558 = vld [vmem:[#allocation10 + $0x1d8] sm:$0xff]
    %v559 = vld [vmem:[#allocation10 + $0x1e0] sm:$0xff]
    %v560 = vld [vmem:[#allocation10 + $0x1e8] sm:$0xff]
    %v561 = vld [vmem:[#allocation10 + $0x1f0] sm:$0xff]
    %v562 = vld [vmem:[#allocation10 + $0x1f8] sm:$0xff]
    %v563 = vld [vmem:[#allocation10 + $0x200] sm:$0xff]
    %v564 = vld [vmem:[#allocation10 + $0x208] sm:$0xff]
    %v565 = vld [vmem:[#allocation10 + $0x210] sm:$0xff]
    %v566 = vld [vmem:[#allocation10 + $0x218] sm:$0xff]
    %v567 = vld [vmem:[#allocation10 + $0x220] sm:$0xff]
    %v568 = vld [vmem:[#allocation10 + $0x228] sm:$0xff]
    %v569 = vld [vmem:[#allocation10 + $0x230] sm:$0xff]
    %v570 = vld [vmem:[#allocation10 + $0x238] sm:$0xff]
    %v571 = vld [vmem:[#allocation10 + $0x240] sm:$0xff]
    %v572 = vld [vmem:[#allocation10 + $0x248] sm:$0xff]
    %v573 = vld [vmem:[#allocation10 + $0x250] sm:$0xff]
    %v574 = vld [vmem:[#allocation10 + $0x258] sm:$0xff]
    %v575 = vld [vmem:[#allocation10 + $0x260] sm:$0xff]
    %v576 = vld [vmem:[#allocation10 + $0x268] sm:$0xff]
    %v577 = vld [vmem:[#allocation10 + $0x270] sm:$0xff]
    %v578 = vld [vmem:[#allocation10 + $0x278] sm:$0xff]
    %v579 = vld [vmem:[#allocation10 + $0x280] sm:$0xff]
    %v580 = vld [vmem:[#allocation10 + $0x288] sm:$0xff]
    %v581 = vld [vmem:[#allocation10 + $0x290] sm:$0xff]
    %v582 = vld [vmem:[#allocation10 + $0x298] sm:$0xff]
    %v583 = vld [vmem:[#allocation10 + $0x2a0] sm:$0xff]
    %v584 = vld [vmem:[#allocation10 + $0x2a8] sm:$0xff]
    %v585 = vld [vmem:[#allocation10 + $0x2b0] sm:$0xff]
    %v586 = vld [vmem:[#allocation10 + $0x2b8] sm:$0xff]
    %v587 = vld [vmem:[#allocation10 + $0x2c0] sm:$0xff]
    %v588 = vld [vmem:[#allocation10 + $0x2c8] sm:$0xff]
    %v589 = vld [vmem:[#allocation10 + $0x2d0] sm:$0xff]
    %v590 = vld [vmem:[#allocation10 + $0x2d8] sm:$0xff]
    %v591 = vld [vmem:[#allocation10 + $0x2e0] sm:$0xff]
    %v592 = vld [vmem:[#allocation10 + $0x2e8] sm:$0xff]
    %v593 = vld [vmem:[#allocation10 + $0x2f0] sm:$0xff]
    %v594 = vld [vmem:[#allocation10 + $0x2f8] sm:$0xff]
    %v595 = vld [vmem:[%s7] sm:$0x3]
    %v597 = vlaneseq
    %v598 = vshrl.u32 %v597, 7
    %v599 = vsub.s32 0, %v598
    %v600 = vrot.slane %v595, %v599
    %v601 = vlaneseq
    %v602 = vshrl.u32 %v601, 7
    %v603 = vsub.s32 1, %v602
    %v604 = vrot.slane %v595, %v603
    %607 = vmatprep.subr.mxu0 %v530
    %608 = vmatpush1.msra.mxu0 %v529
    %609 = vmatprep.subr.mxu0 %v528
    %610 = vmatpush1.msra.mxu0 %v527
    %611 = vmatprep.subr.mxu0 %v526
    %612 = vmatpush1.msra.mxu0 %v525
    %613 = vmatprep.subr.mxu0 %v524
    %614 = vmatpush1.msra.mxu0 %v523
    %615 = vmatprep.subr.mxu0 %v522
    %616 = vmatpush1.msra.mxu0 %v521
    %617 = vmatprep.subr.mxu0 %v520
    %618 = vmatpush1.msra.mxu0 %v519
    %619 = vmatprep.subr.mxu0 %v518
    %620 = vmatpush1.msra.mxu0 %v517
    %621 = vmatprep.subr.mxu0 %v516
    %622 = vmatpush1.msra.mxu0 %v515
    %623 = vmatprep.subr.mxu0 %v514
    %624 = vmatpush1.msra.mxu0 %v513
    %625 = vmatprep.subr.mxu0 %v512
    %626 = vmatpush1.msra.mxu0 %v511
    %627 = vmatprep.subr.mxu0 %v510
    %628 = vmatpush1.msra.mxu0 %v509
    %629 = vmatprep.subr.mxu0 %v508
    %630 = vmatpush1.msra.mxu0 %v507
    %631 = vmatprep.subr.mxu0 %v506
    %632 = vmatpush1.msra.mxu0 %v505
    %633 = vmatprep.subr.mxu0 %v504
    %634 = vmatpush1.msra.mxu0 %v503
    %635 = vmatprep.subr.mxu0 %v502
    %636 = vmatpush1.msra.mxu0 %v501
    %637 = vmatprep.subr.mxu0 %v500
    %638 = vmatpush1.msra.mxu0 %v499
    %639 = vmatprep.subr.mxu0 %v562
    %640 = vmatpush2.msra.mxu0 %v561
    %641 = vmatprep.subr.mxu0 %v560
    %642 = vmatpush2.msra.mxu0 %v559
    %643 = vmatprep.subr.mxu0 %v558
    %644 = vmatpush2.msra.mxu0 %v557
    %645 = vmatprep.subr.mxu0 %v556
    %646 = vmatpush2.msra.mxu0 %v555
    %647 = vmatprep.subr.mxu0 %v554
    %648 = vmatpush2.msra.mxu0 %v553
    %649 = vmatprep.subr.mxu0 %v552
    %650 = vmatpush2.msra.mxu0 %v551
    %651 = vmatprep.subr.mxu0 %v550
    %652 = vmatpush2.msra.mxu0 %v549
    %653 = vmatprep.subr.mxu0 %v548
    %654 = vmatpush2.msra.mxu0 %v547
    %655 = vmatprep.subr.mxu0 %v546
    %656 = vmatpush2.msra.mxu0 %v545
    %657 = vmatprep.subr.mxu0 %v544
    %658 = vmatpush2.msra.mxu0 %v543
    %659 = vmatprep.subr.mxu0 %v542
    %660 = vmatpush2.msra.mxu0 %v541
    %661 = vmatprep.subr.mxu0 %v540
    %662 = vmatpush2.msra.mxu0 %v539
    %663 = vmatprep.subr.mxu0 %v538
    %664 = vmatpush2.msra.mxu0 %v537
    %665 = vmatprep.subr.mxu0 %v536
    %666 = vmatpush2.msra.mxu0 %v535
    %667 = vmatprep.subr.mxu0 %v534
    %668 = vmatpush2.msra.mxu0 %v533
    %669 = vmatprep.subr.mxu0 %v532
    %670 = vmatpush2.msra.mxu0 %v531
    %671 = vmatprep.mubr.f32.mxu0 %v488
    %672 = vmatmul.mubr.f32.gmra.mxu0 %v487
    %v673 = vpop.f32.mrf.mxu0
    %v674 = vadd.f32 %v600, %v673
    %v675 = vpop.f32.mrf.mxu0
    %v676 = vadd.f32 %v604, %v675
    %677 = vmatprep.mubr.f32.mxu0 %v491
    %678 = vmatmul.mubr.f32.gmra.mxu0 %v490
    %v679 = vpop.f32.mrf.mxu0
    %v680 = vadd.f32 %v600, %v679
    %v681 = vpop.f32.mrf.mxu0
    %v682 = vadd.f32 %v604, %v681
    %683 = vmatprep.mubr.f32.mxu0 %v494
    %684 = vmatmul.mubr.f32.gmra.mxu0 %v493
    %v685 = vpop.f32.mrf.mxu0
    %v686 = vadd.f32 %v600, %v685
    %v687 = vpop.f32.mrf.mxu0
    %v688 = vadd.f32 %v604, %v687
    %689 = vmatprep.mubr.f32.mxu0 %v497
    %690 = vmatmul.mubr.f32.gmra.mxu0 %v496
    %v691 = vpop.f32.mrf.mxu0
    %v692 = vadd.f32 %v600, %v691
    %v693 = vpop.f32.mrf.mxu0
    %v694 = vadd.f32 %v604, %v693
    %695 = vdwg.mxu0
    %696 = vmatprep.subr.mxu0 %v594
    %697 = vmatpush1.msra.mxu0 %v593
    %698 = vmatprep.subr.mxu0 %v592
    %699 = vmatpush1.msra.mxu0 %v591
    %700 = vmatprep.subr.mxu0 %v590
    %701 = vmatpush1.msra.mxu0 %v589
    %702 = vmatprep.subr.mxu0 %v588
    %703 = vmatpush1.msra.mxu0 %v587
    %704 = vmatprep.subr.mxu0 %v586
    %705 = vmatpush1.msra.mxu0 %v585
    %706 = vmatprep.subr.mxu0 %v584
    %707 = vmatpush1.msra.mxu0 %v583
    %708 = vmatprep.subr.mxu0 %v582
    %709 = vmatpush1.msra.mxu0 %v581
    %710 = vmatprep.subr.mxu0 %v580
    %711 = vmatpush1.msra.mxu0 %v579
    %712 = vmatprep.subr.mxu0 %v578
    %713 = vmatpush1.msra.mxu0 %v577
    %714 = vmatprep.subr.mxu0 %v576
    %715 = vmatpush1.msra.mxu0 %v575
    %716 = vmatprep.subr.mxu0 %v574
    %717 = vmatpush1.msra.mxu0 %v573
    %718 = vmatprep.subr.mxu0 %v572
    %719 = vmatpush1.msra.mxu0 %v571
    %720 = vmatprep.subr.mxu0 %v570
    %721 = vmatpush1.msra.mxu0 %v569
    %722 = vmatprep.subr.mxu0 %v568
    %723 = vmatpush1.msra.mxu0 %v567
    %724 = vmatprep.subr.mxu0 %v566
    %725 = vmatpush1.msra.mxu0 %v565
    %726 = vmatprep.subr.mxu0 %v564
    %727 = vmatpush1.msra.mxu0 %v563
    %728 = vmatprep.subr.mxu0 0.0
    %729 = vmatpush2.msra.mxu0 0.0
    %730 = vmatprep.subr.mxu0 0.0
    %731 = vmatpush2.msra.mxu0 0.0
    %732 = vmatprep.subr.mxu0 0.0
    %733 = vmatpush2.msra.mxu0 0.0
    %734 = vmatprep.subr.mxu0 0.0
    %735 = vmatpush2.msra.mxu0 0.0
    %736 = vmatprep.subr.mxu0 0.0
    %737 = vmatpush2.msra.mxu0 0.0
    %738 = vmatprep.subr.mxu0 0.0
    %739 = vmatpush2.msra.mxu0 0.0
    %740 = vmatprep.subr.mxu0 0.0
    %741 = vmatpush2.msra.mxu0 0.0
    %742 = vmatprep.subr.mxu0 0.0
    %743 = vmatpush2.msra.mxu0 0.0
    %744 = vmatprep.subr.mxu0 0.0
    %745 = vmatpush2.msra.mxu0 0.0
    %746 = vmatprep.subr.mxu0 0.0
    %747 = vmatpush2.msra.mxu0 0.0
    %748 = vmatprep.subr.mxu0 0.0
    %749 = vmatpush2.msra.mxu0 0.0
    %750 = vmatprep.subr.mxu0 0.0
    %751 = vmatpush2.msra.mxu0 0.0
    %752 = vmatprep.subr.mxu0 0.0
    %753 = vmatpush2.msra.mxu0 0.0
    %754 = vmatprep.subr.mxu0 0.0
    %755 = vmatpush2.msra.mxu0 0.0
    %756 = vmatprep.subr.mxu0 0.0
    %757 = vmatpush2.msra.mxu0 0.0
    %758 = vmatprep.subr.mxu0 0.0
    %759 = vmatpush2.msra.mxu0 0.0
    %760 = vmatprep.mubr.f32.mxu0 0.0
    %761 = vmatmul.mubr.f32.gmra.mxu0 %v489
    %v762 = vpop.f32.mrf.mxu0
    %v763 = vadd.f32 %v674, %v762
    %v764 = vpop.f32.mrf.mxu0
    %v765 = vadd.f32 %v676, %v764
    %766 = vmatprep.mubr.f32.mxu0 0.0
    %767 = vmatmul.mubr.f32.gmra.mxu0 %v492
    %v768 = vpop.f32.mrf.mxu0
    %v769 = vadd.f32 %v680, %v768
    %v770 = vpop.f32.mrf.mxu0
    %v771 = vadd.f32 %v682, %v770
    %772 = vmatprep.mubr.f32.mxu0 0.0
    %773 = vmatmul.mubr.f32.gmra.mxu0 %v495
    %v774 = vpop.f32.mrf.mxu0
    %v775 = vadd.f32 %v686, %v774
    %v776 = vpop.f32.mrf.mxu0
    %v777 = vadd.f32 %v688, %v776
    %778 = vmatprep.mubr.f32.mxu0 0.0
    %779 = vmatmul.mubr.f32.gmra.mxu0 %v498
    %v780 = vpop.f32.mrf.mxu0
    %v781 = vadd.f32 %v692, %v780
    %v782 = vpop.f32.mrf.mxu0
    %v783 = vadd.f32 %v694, %v782
    %784 = vdwg.mxu0
    %v785 = vtanh.pop %v763
    %v786 = vtanh.pop %v765
    %v787 = vtanh.pop %v769
    %v788 = vtanh.pop %v771
    %v789 = vtanh.pop %v775
    %v790 = vtanh.pop %v777
    %v791 = vtanh.pop %v781
    %v792 = vtanh.pop %v783
    %v793 = vrot.slane %v785, 4
    %v794 = vmax.f32 %v785, %v793
    %v795 = vrot.slane %v794, 2
    %v796 = vmax.f32 %v794, %v795
    %v797 = vrot.slane %v796, 1
    %v798 = vmax.f32 %v796, %v797
    %v799 = vrot.slane %v786, 4
    %v800 = vmax.f32 %v786, %v799
    %v801 = vrot.slane %v800, 2
    %v802 = vmax.f32 %v800, %v801
    %v803 = vrot.slane %v802, 1
    %v804 = vmax.f32 %v802, %v803
    %v805 = vrot.slane %v787, 4
    %v806 = vmax.f32 %v787, %v805
    %v807 = vrot.slane %v806, 2
    %v808 = vmax.f32 %v806, %v807
    %v809 = vrot.slane %v808, 1
    %v810 = vmax.f32 %v808, %v809
    %v811 = vrot.slane %v788, 4
    %v812 = vmax.f32 %v788, %v811
    %v813 = vrot.slane %v812, 2
    %v814 = vmax.f32 %v812, %v813
    %v815 = vrot.slane %v814, 1
    %v816 = vmax.f32 %v814, %v815
    %v817 = vrot.slane %v789, 4
    %v818 = vmax.f32 %v789, %v817
    %v819 = vrot.slane %v818, 2
    %v820 = vmax.f32 %v818, %v819
    %v821 = vrot.slane %v820, 1
    %v822 = vmax.f32 %v820, %v821
    %v823 = vrot.slane %v790, 4
    %v824 = vmax.f32 %v790, %v823
    %v825 = vrot.slane %v824, 2
    %v826 = vmax.f32 %v824, %v825
    %v827 = vrot.slane %v826, 1
    %v828 = vmax.f32 %v826, %v827
    %v829 = vrot.slane %v791, 4
    %v830 = vmax.f32 %v791, %v829
    %v831 = vrot.slane %v830, 2
    %v832 = vmax.f32 %v830, %v831
    %v833 = vrot.slane %v832, 1
    %v834 = vmax.f32 %v832, %v833
    %v835 = vrot.slane %v792, 4
    %v836 = vmax.f32 %v792, %v835
    %v837 = vrot.slane %v836, 2
    %v838 = vmax.f32 %v836, %v837
    %v839 = vrot.slane %v838, 1
    %v840 = vmax.f32 %v838, %v839
    %v841 = vld [vmem:[#allocation11] sm:$0xff]
    %v842 = vld [vmem:[#allocation11 + $0x8] sm:$0xff]
    %v843 = vld [vmem:[#allocation11 + $0x10] sm:$0xff]
    %v844 = vld [vmem:[#allocation11 + $0x18] sm:$0xff]
    %v845 = vld [vmem:[#allocation11 + $0x20] sm:$0xff]
    %v846 = vld [vmem:[#allocation11 + $0x28] sm:$0xff]
    %v847 = vld [vmem:[#allocation11 + $0x30] sm:$0xff]
    %v848 = vld [vmem:[#allocation11 + $0x38] sm:$0xff]
    %v849 = vld [vmem:[#allocation11 + $0x40] sm:$0xff]
    %v850 = vld [vmem:[#allocation11 + $0x48] sm:$0xff]
    %v851 = vld [vmem:[#allocation11 + $0x50] sm:$0xff]
    %v852 = vld [vmem:[#allocation11 + $0x58] sm:$0xff]
    %v853 = vld [vmem:[#allocation11 + $0x60] sm:$0xff]
    %v854 = vld [vmem:[#allocation11 + $0x68] sm:$0xff]
    %v855 = vld [vmem:[#allocation11 + $0x70] sm:$0xff]
    %v856 = vld [vmem:[#allocation11 + $0x78] sm:$0xff]
    %v857 = vld [vmem:[#allocation11 + $0x80] sm:$0xff]
    %v858 = vld [vmem:[#allocation11 + $0x88] sm:$0xff]
    %v859 = vld [vmem:[#allocation11 + $0x90] sm:$0xff]
    %v860 = vld [vmem:[#allocation11 + $0x98] sm:$0xff]
    %v861 = vld [vmem:[#allocation11 + $0xa0] sm:$0xff]
    %v862 = vld [vmem:[#allocation11 + $0xa8] sm:$0xff]
    %v863 = vld [vmem:[#allocation11 + $0xb0] sm:$0xff]
    %v864 = vld [vmem:[#allocation11 + $0xb8] sm:$0xff]
    %v865 = vld [vmem:[#allocation11 + $0xc0] sm:$0xff]
    %v866 = vld [vmem:[#allocation11 + $0xc8] sm:$0xff]
    %v867 = vld [vmem:[#allocation11 + $0xd0] sm:$0xff]
    %v868 = vld [vmem:[#allocation11 + $0xd8] sm:$0xff]
    %v869 = vld [vmem:[#allocation11 + $0xe0] sm:$0xff]
    %v870 = vld [vmem:[#allocation11 + $0xe8] sm:$0xff]
    %v871 = vld [vmem:[#allocation11 + $0xf0] sm:$0xff]
    %v872 = vld [vmem:[#allocation11 + $0xf8] sm:$0xff]
    %v873 = vld [vmem:[%s9] sm:$0x1]
    %v875 = vlaneseq
    %v876 = vshrl.u32 %v875, 7
    %v877 = vsub.s32 0, %v876
    %v878 = vrot.slane %v873, %v877
    %vm888 = vcmask 1041409
    %v889 = vsel %vm888, %v810, %v798
    %vm890 = vcmask 1042434
    %v891 = vsel %vm890, %v822, %v889
    %vm892 = vcmask 1043459
    %v893 = vsel %vm892, %v834, %v891
    %v894 = vsel %vm888, %v816, %v804
    %v895 = vsel %vm890, %v828, %v894
    %v896 = vsel %vm892, %v840, %v895
    %899 = vmatprep.subr.mxu0 0.0
    %900 = vmatpush1.msra.mxu0 %v856
    %901 = vmatprep.subr.mxu0 0.0
    %902 = vmatpush1.msra.mxu0 %v855
    %903 = vmatprep.subr.mxu0 0.0
    %904 = vmatpush1.msra.mxu0 %v854
    %905 = vmatprep.subr.mxu0 0.0
    %906 = vmatpush1.msra.mxu0 %v853
    %907 = vmatprep.subr.mxu0 0.0
    %908 = vmatpush1.msra.mxu0 %v852
    %909 = vmatprep.subr.mxu0 0.0
    %910 = vmatpush1.msra.mxu0 %v851
    %911 = vmatprep.subr.mxu0 0.0
    %912 = vmatpush1.msra.mxu0 %v850
    %913 = vmatprep.subr.mxu0 0.0
    %914 = vmatpush1.msra.mxu0 %v849
    %915 = vmatprep.subr.mxu0 0.0
    %916 = vmatpush1.msra.mxu0 %v848
    %917 = vmatprep.subr.mxu0 0.0
    %918 = vmatpush1.msra.mxu0 %v847
    %919 = vmatprep.subr.mxu0 0.0
    %920 = vmatpush1.msra.mxu0 %v846
    %921 = vmatprep.subr.mxu0 0.0
    %922 = vmatpush1.msra.mxu0 %v845
    %923 = vmatprep.subr.mxu0 0.0
    %924 = vmatpush1.msra.mxu0 %v844
    %925 = vmatprep.subr.mxu0 0.0
    %926 = vmatpush1.msra.mxu0 %v843
    %927 = vmatprep.subr.mxu0 0.0
    %928 = vmatpush1.msra.mxu0 %v842
    %929 = vmatprep.subr.mxu0 0.0
    %930 = vmatpush1.msra.mxu0 %v841
    %931 = vmatprep.subr.mxu0 0.0
    %932 = vmatpush2.msra.mxu0 %v872
    %933 = vmatprep.subr.mxu0 0.0
    %934 = vmatpush2.msra.mxu0 %v871
    %935 = vmatprep.subr.mxu0 0.0
    %936 = vmatpush2.msra.mxu0 %v870
    %937 = vmatprep.subr.mxu0 0.0
    %938 = vmatpush2.msra.mxu0 %v869
    %939 = vmatprep.subr.mxu0 0.0
    %940 = vmatpush2.msra.mxu0 %v868
    %941 = vmatprep.subr.mxu0 0.0
    %942 = vmatpush2.msra.mxu0 %v867
    %943 = vmatprep.subr.mxu0 0.0
    %944 = vmatpush2.msra.mxu0 %v866
    %945 = vmatprep.subr.mxu0 0.0
    %946 = vmatpush2.msra.mxu0 %v865
    %947 = vmatprep.subr.mxu0 0.0
    %948 = vmatpush2.msra.mxu0 %v864
    %949 = vmatprep.subr.mxu0 0.0
    %950 = vmatpush2.msra.mxu0 %v863
    %951 = vmatprep.subr.mxu0 0.0
    %952 = vmatpush2.msra.mxu0 %v862
    %953 = vmatprep.subr.mxu0 0.0
    %954 = vmatpush2.msra.mxu0 %v861
    %955 = vmatprep.subr.mxu0 0.0
    %956 = vmatpush2.msra.mxu0 %v860
    %957 = vmatprep.subr.mxu0 0.0
    %958 = vmatpush2.msra.mxu0 %v859
    %959 = vmatprep.subr.mxu0 0.0
    %960 = vmatpush2.msra.mxu0 %v858
    %961 = vmatprep.subr.mxu0 0.0
    %962 = vmatpush2.msra.mxu0 %v857
    %963 = vmatprep.mubr.f32.mxu0 %v896
    %964 = vmatmul.mubr.f32.gmra.mxu0 %v893
    %v965 = vpop.f32.mrf.mxu0
    %v966 = vadd.f32 %v878, %v965
    %v967 = vpop.f32.mrf.mxu0
    %968 = vdwg.mxu0
    %v969 = vtanh.pop %v966
    %v970 = vmul.f32 %v486, %v969
    %vm971 = vcmask 1040384
    %v972 = vsel %vm971, %v970, 0.0
    %973 = vadd.xlane.f32.xlu0 %v972
    %v974 = vpop.xlane.xlu0 %973
    %v975 = vrot.slane %v974, 4
    %v976 = vadd.f32 %v974, %v975
    %v977 = vrot.slane %v976, 2
    %v978 = vadd.f32 %v976, %v977
    %v979 = vrot.slane %v978, 1
    %v980 = vadd.f32 %v978, %v979
    %s981 = vtos %v980
    %v982 = vlaneseq
    %v983 = vshrl.u32 %v982, 7
    %v984 = vsub.s32 0, %v983
    %v985 = vrot.slane %v486, %v984
    %v986 = vmul.f32 %v985, %v969
    %vm987 = vcmask 1043457
    %v988 = vsel %vm987, %v986, 0.0
    %989 = vadd.xlane.f32.xlu0 %v988
    %v990 = vpop.xlane.xlu0 %989
    %v991 = vstv %s981
    %v992 = vadd.f32 %v991, %v990
    %993 = vst [vmem:[#allocation13 - $0x1] sm:$0xe] %v992
    // Predicated region
    $region66: #{tpu_custom_call.1} parent=1 // pred_check
      _
    $region67: #{tpu_custom_call.1} parent=1 // pred_check_branch
      %995 = sbr.rel (0) target = $region69
    $region68: #{tpu_custom_call.1} parent=1 // pred_region
      %s997 = ssub.s32 64, 64
      %998 = vsyncadd [#allocation4], %s997
      %s1000 = sshll.u32 [#allocation13], 4
      %s1001 = int_to_ptr.vmem [resolvable:$true] %s1000
      %1003 = dma.vmem_to_hbm [thread:$0]  %s1001, 64, %s10, [#allocation4]
    $region69: #{tpu_custom_call.1} parent=1 // pred_fallthru
      _
    // Predicated region
    $region70: #{tpu_custom_call.1} parent=1 // pred_check
      _
    $region71: #{tpu_custom_call.1} parent=1 // pred_check_branch
      %1005 = sbr.rel (0) target = $region73
    $region72: #{tpu_custom_call.1} parent=1 // pred_region
      %1006 = dma.done [#allocation4], 64
    $region73: #{tpu_custom_call.1} parent=1 // pred_fallthru
      _
    %1007 = vsyncpa [#allocation3], 1
    %1008 = vsyncpa [#allocation6], 1
    %1009 = vsyncpa [#allocation9], 1
    %1010 = vsyncpa [#allocation12], 1
    %1011 = vsyncpa [#allocation4], 1

</llo_original>
